<compile_context>
chip_gen: v7x
topology: tpu7x:2x2x1
jax: 0.10.0
libtpu: 0.0.40
codegen_flags: <defaults>
</compile_context>

<pallas_src>
from functools import partial, reduce

import jax
import jax.numpy as jnp
from jax import lax
from jax.experimental import pallas as pl
from jax.experimental.pallas import tpu as pltpu


# ----------------------------------------------------------------------------
# Kernel
# ----------------------------------------------------------------------------
def _policy_kernel(x_ref, w1_ref, b1_ref, w2_ref, b2_ref, wh_ref, bh_ref,
                   out_ref, *, a_dim):
    # x tile: (TB, D_in) bf16 already; f32 accumulation on the MXU.
    x = x_ref[...]

    # bf16 tanh (EUP bf16 on v6e/v7x); next matmul consumes bf16 anyway.
    h1 = jnp.tanh(
        (jnp.dot(x, w1_ref[...], preferred_element_type=jnp.float32)
         + b1_ref[...]).astype(jnp.bfloat16))
    h2 = jnp.tanh(
        (jnp.dot(h1, w2_ref[...], preferred_element_type=jnp.float32)
         + b2_ref[...]).astype(jnp.bfloat16))

    # Fused heads: lanes [0:A] = means linear, lanes [A:2A] = stddev linear,
    # lanes [2A:] = zero padding (sliced off in the wrapper).
    y = jnp.dot(h2, wh_ref[...], preferred_element_type=jnp.float32) + bh_ref[...]

    # Stable softplus == log(1 + exp(y)) without overflow (EUP ops).
    sp = jnp.maximum(y, 0.0) + jnp.log1p(jnp.exp(-jnp.abs(y)))

    lane = lax.broadcasted_iota(jnp.int32, y.shape, dimension=1)
    out_ref[...] = jnp.where(lane >= a_dim, sp, y).astype(out_ref.dtype)


# ----------------------------------------------------------------------------
# pallas_call wrapper
# ----------------------------------------------------------------------------
def _round_up8(n):
    return ((n + 7) // 8) * 8


def _run(x_bf16, p, a_dim, block_b):
    """x_bf16: (B, D_in) bf16 (no padding).  Returns (B, head_pad) bf16."""
    b, d_in = x_bf16.shape
    head_pad = p["wh"].shape[1]
    kern = partial(_policy_kernel, a_dim=a_dim)
    out_shape = jax.ShapeDtypeStruct((b, head_pad), jnp.bfloat16)
    args = (x_bf16, p["w1"], p["b1"], p["w2"], p["b2"], p["wh"], p["bh"])

    if b < 256:
        # Single invocation: whole working set lives in VMEM; no grid, no
        # double-buffering.  (Too few rows to be worth splitting across TCs.)
        vmem = pl.BlockSpec(memory_space=pltpu.MemorySpace.VMEM)
        return pl.pallas_call(
            kern,
            out_shape=out_shape,
            in_specs=[vmem] * 7,
            out_specs=vmem,
        )(*args)

    # Grid path: pick a block so there are always >= 2 blocks (v7x megacore),
    # each >= 128 rows and a multiple of 8.  Ragged last block handled by
    # Pallas; the wrapper only ever uses the first `b` output rows.
    if b >= 2 * block_b:
        tb = block_b
    else:
        tb = max(128, _round_up8(pl.cdiv(b, 2)))
    grid = (pl.cdiv(b, tb),)

    const = lambda shp: pl.BlockSpec(shp, lambda i, _s=len(shp): (0,) * _s)
    return pl.pallas_call(
        kern,
        out_shape=out_shape,
        grid=grid,
        in_specs=[
            pl.BlockSpec((tb, d_in), lambda i: (i, 0)),
            const(p["w1"].shape), const(p["b1"].shape),
            const(p["w2"].shape), const(p["b2"].shape),
            const(p["wh"].shape), const(p["bh"].shape),
        ],
        out_specs=pl.BlockSpec((tb, head_pad), lambda i: (i, 0)),
        compiler_params=pltpu.CompilerParams(
            dimension_semantics=("parallel",)),
    )(*args)


def gaussian_perceptron_policy_forward(x, params, *, block_b=512):
    """Single observation (matches the PyTorch module: torch.flatten(x)).
    Returns (means, stddevs), each f32 of shape (A,)."""
    a_dim = params["a_dim"]
    d_in = params["w1"].shape[0]
    x_flat = jnp.reshape(x, (1, d_in)).astype(jnp.bfloat16)
    out = _run(x_flat, params, a_dim, block_b)
    return (out[0, :a_dim].astype(jnp.float32),
            out[0, a_dim:2 * a_dim].astype(jnp.float32))


def gaussian_perceptron_policy_forward_batched(xs, params, *, block_b=512):
    """Batched variant: xs has shape (B, *obs_space_dims).
    Returns (means, stddevs), each f32 of shape (B, A)."""
    a_dim = params["a_dim"]
    d_in = params["w1"].shape[0]
    b = xs.shape[0]
    x_flat = jnp.reshape(xs, (b, d_in)).astype(jnp.bfloat16)
    out = _run(x_flat, params, a_dim, block_b)
    return (out[:b, :a_dim].astype(jnp.float32),
            out[:b, a_dim:2 * a_dim].astype(jnp.float32))


# ----------------------------------------------------------------------------
# Parameter construction / preparation
# ----------------------------------------------------------------------------
def init_params(key, obs_space_dims, action_space_dims, hidden1=256, hidden2=256):
    """f32 params mimicking nn.Linear default init (uniform +-1/sqrt(fan_in)),
    stored as (in_features, out_features)."""
    inputs_ = reduce(lambda a, b: a * b, obs_space_dims)
    keys = jax.random.split(key, 8)

    def linear(kw, kb, fan_in, fan_out):
        bound = 1.0 / jnp.sqrt(jnp.asarray(fan_in, jnp.float32))
        w = jax.random.uniform(kw, (fan_in, fan_out), jnp.float32, -bound, bound)
        b = jax.random.uniform(kb, (1, fan_out), jnp.float32, -bound, bound)
        return w, b

    w1, b1 = linear(keys[0], keys[1], inputs_, hidden1)
    w2, b2 = linear(keys[2], keys[3], hidden1, hidden2)
    wm, bm = linear(keys[4], keys[5], hidden2, action_space_dims)
    ws, bs = linear(keys[6], keys[7], hidden2, action_space_dims)
    return {"w1": w1, "b1": b1, "w2": w2, "b2": b2,
            "wm": wm, "bm": bm, "ws": ws, "bs": bs}


def prepare_params(p, action_space_dims):
    """bf16 weight streaming + fused/lane-padded head (means || stddevs).
    Biases stay f32 (added after the f32-accumulated matmul)."""
    a = action_space_dims
    h2 = p["w2"].shape[1]
    head_pad = max(128, ((2 * a + 127) // 128) * 128)

    wh = jnp.zeros((h2, head_pad), jnp.float32)
    wh = wh.at[:, :a].set(p["wm"]).at[:, a:2 * a].set(p["ws"])
    bh = jnp.zeros((1, head_pad), jnp.float32)
    bh = bh.at[:, :a].set(p["bm"][0]).at[:, a:2 * a].set(p["bs"][0])

    return {
        "w1": p["w1"].astype(jnp.bfloat16), "b1": p["b1"],
        "w2": p["w2"].astype(jnp.bfloat16), "b2": p["b2"],
        "wh": wh.astype(jnp.bfloat16), "bh": bh,
        "a_dim": a,
    }


# ----------------------------------------------------------------------------
# Self-test
# ----------------------------------------------------------------------------
def _reference(x_flat, p):
    """Pure-JAX f32 reference (stable softplus, identical math)."""
    h = jnp.tanh(x_flat @ p["w1"] + p["b1"])
    h = jnp.tanh(h @ p["w2"] + p["b2"])
    means = h @ p["wm"] + p["bm"]
    s = h @ p["ws"] + p["bs"]
    stddevs = jnp.maximum(s, 0.0) + jnp.log1p(jnp.exp(-jnp.abs(s)))
    return means, stddevs


if __name__ == "__main__":
    key = jax.random.PRNGKey(0)
    k_obs, k_small, k_big, k_params = jax.random.split(key, 4)

    obs_space_dims = (4, 16, 16)   # flattened -> 1024 inputs
    action_space_dims = 4

    params_f32 = init_params(k_params, obs_space_dims, action_space_dims)
    params = prepare_params(params_f32, action_space_dims)

    # --- single observation (module semantics: flatten -> (A,) outputs) ------
    x = jax.random.normal(k_obs, obs_space_dims, dtype=jnp.float32)
    means, stddevs = gaussian_perceptron_policy_forward(x, params)
    jax.block_until_ready((means, stddevs))

    ref_m, ref_s = _reference(jnp.reshape(x, (1, -1)), params_f32)
    assert means.shape == (action_space_dims,)
    assert stddevs.shape == (action_space_dims,)
    assert jnp.allclose(means, ref_m[0], atol=5e-2, rtol=5e-2)
    assert jnp.allclose(stddevs, ref_s[0], atol=5e-2, rtol=5e-2)
    assert bool(jnp.all(jnp.isfinite(means))) and bool(jnp.all(jnp.isfinite(stddevs)))

    # --- small batch (no-grid, untiled-VMEM path; B not a multiple of 8) -----
    B1 = 20
    xb1 = jax.random.normal(k_small, (B1,) + obs_space_dims, dtype=jnp.float32)
    m1, s1 = gaussian_perceptron_policy_forward_batched(xb1, params)
    jax.block_until_ready((m1, s1))
    rm1, rs1 = _reference(jnp.reshape(xb1, (B1, -1)), params_f32)
    assert m1.shape == (B1, action_space_dims) and s1.shape == (B1, action_space_dims)
    assert jnp.allclose(m1, rm1, atol=5e-2, rtol=5e-2)
    assert jnp.allclose(s1, rs1, atol=5e-2, rtol=5e-2)

    # --- larger batch: grid path, 2 parallel blocks, ragged last block -------
    B2 = 260
    xb2 = jax.random.normal(k_big, (B2,) + obs_space_dims, dtype=jnp.float32)
    m2, s2 = gaussian_perceptron_policy_forward_batched(xb2, params)
    jax.block_until_ready((m2, s2))
    rm2, rs2 = _reference(jnp.reshape(xb2, (B2, -1)), params_f32)
    assert m2.shape == (B2, action_space_dims) and s2.shape == (B2, action_space_dims)
    assert jnp.allclose(m2, rm2, atol=5e-2, rtol=5e-2)
    assert jnp.allclose(s2, rs2, atol=5e-2, rtol=5e-2)
    assert bool(jnp.all(jnp.isfinite(m2))) and bool(jnp.all(jnp.isfinite(s2)))

    print("KERNEL_OK")
</pallas_src>

<mosaic_0001>
module attributes {stable_mosaic.version = 11 : i64} {
  func.func @_policy_kernel(%arg0: memref<1x1024xbf16, #tpu.memory_space<vmem>>, %arg1: memref<1024x256xbf16, #tpu.memory_space<vmem>>, %arg2: memref<1x256xf32, #tpu.memory_space<vmem>>, %arg3: memref<256x256xbf16, #tpu.memory_space<vmem>>, %arg4: memref<1x256xf32, #tpu.memory_space<vmem>>, %arg5: memref<256x128xbf16, #tpu.memory_space<vmem>>, %arg6: memref<1x128xf32, #tpu.memory_space<vmem>>, %arg7: memref<1x128xbf16, #tpu.memory_space<vmem>>) attributes {dimension_semantics = [], scalar_prefetch = 0 : i64, scratch_operands = 0 : i64, tpu.core_type = #tpu.core_type<tc>} {
    %c0 = arith.constant 0 : index
    %c0_0 = arith.constant 0 : index
    %0 = vector.load %arg0[%c0, %c0_0] : memref<1x1024xbf16, #tpu.memory_space<vmem>>, vector<1x1024xbf16>
    %c0_1 = arith.constant 0 : index
    %c0_2 = arith.constant 0 : index
    %1 = vector.load %arg1[%c0_1, %c0_2] : memref<1024x256xbf16, #tpu.memory_space<vmem>>, vector<1024x256xbf16>
    %cst = arith.constant dense<0.000000e+00> : vector<1x256xf32>
    %2 = tpu.matmul %0, %1, %cst {dimension_numbers = #tpu.dot_dimension_numbers<[1], [0], [0], [1], [0, 0, 1, 1], [], []>} : vector<1x1024xbf16>, vector<1024x256xbf16>, vector<1x256xf32> -> vector<1x256xf32>
    %c0_3 = arith.constant 0 : index
    %c0_4 = arith.constant 0 : index
    %3 = vector.load %arg2[%c0_3, %c0_4] : memref<1x256xf32, #tpu.memory_space<vmem>>, vector<1x256xf32>
    %4 = arith.addf %2, %3 : vector<1x256xf32>
    %5 = arith.truncf %4 : vector<1x256xf32> to vector<1x256xbf16>
    %6 = math.tanh %5 : vector<1x256xbf16>
    %c0_5 = arith.constant 0 : index
    %c0_6 = arith.constant 0 : index
    %7 = vector.load %arg3[%c0_5, %c0_6] : memref<256x256xbf16, #tpu.memory_space<vmem>>, vector<256x256xbf16>
    %cst_7 = arith.constant dense<0.000000e+00> : vector<1x256xf32>
    %8 = tpu.matmul %6, %7, %cst_7 {dimension_numbers = #tpu.dot_dimension_numbers<[1], [0], [0], [1], [0, 0, 1, 1], [], []>} : vector<1x256xbf16>, vector<256x256xbf16>, vector<1x256xf32> -> vector<1x256xf32>
    %c0_8 = arith.constant 0 : index
    %c0_9 = arith.constant 0 : index
    %9 = vector.load %arg4[%c0_8, %c0_9] : memref<1x256xf32, #tpu.memory_space<vmem>>, vector<1x256xf32>
    %10 = arith.addf %8, %9 : vector<1x256xf32>
    %11 = arith.truncf %10 : vector<1x256xf32> to vector<1x256xbf16>
    %12 = math.tanh %11 : vector<1x256xbf16>
    %c0_10 = arith.constant 0 : index
    %c0_11 = arith.constant 0 : index
    %13 = vector.load %arg5[%c0_10, %c0_11] : memref<256x128xbf16, #tpu.memory_space<vmem>>, vector<256x128xbf16>
    %cst_12 = arith.constant dense<0.000000e+00> : vector<1x128xf32>
    %14 = tpu.matmul %12, %13, %cst_12 {dimension_numbers = #tpu.dot_dimension_numbers<[1], [0], [0], [1], [0, 0, 1, 1], [], []>} : vector<1x256xbf16>, vector<256x128xbf16>, vector<1x128xf32> -> vector<1x128xf32>
    %c0_13 = arith.constant 0 : index
    %c0_14 = arith.constant 0 : index
    %15 = vector.load %arg6[%c0_13, %c0_14] : memref<1x128xf32, #tpu.memory_space<vmem>>, vector<1x128xf32>
    %16 = arith.addf %14, %15 : vector<1x128xf32>
    %cst_15 = arith.constant 0.000000e+00 : f32
    %17 = vector.broadcast %cst_15 : f32 to vector<1x128xf32>
    %18 = arith.maximumf %16, %17 : vector<1x128xf32>
    %19 = math.absf %16 : vector<1x128xf32>
    %cst_16 = arith.constant 0.000000e+00 : f32
    %20 = vector.broadcast %cst_16 : f32 to vector<1x128xf32>
    %21 = arith.subf %20, %19 : vector<1x128xf32>
    %22 = math.exp %21 : vector<1x128xf32>
    %23 = math.log1p %22 : vector<1x128xf32>
    %24 = arith.addf %18, %23 : vector<1x128xf32>
    %25 = tpu.iota {dimensions = array<i32: 1>} : vector<1x128xi32>
    %c4_i32 = arith.constant 4 : i32
    %26 = vector.broadcast %c4_i32 : i32 to vector<1x128xi32>
    %27 = arith.cmpi sge, %25, %26 : vector<1x128xi32>
    %28 = arith.select %27, %24, %16 : vector<1x128xi1>, vector<1x128xf32>
    %29 = arith.truncf %28 : vector<1x128xf32> to vector<1x128xbf16>
    %c0_17 = arith.constant 0 : index
    %c0_18 = arith.constant 0 : index
    %30 = vector.load %arg7[%c0_17, %c0_18] : memref<1x128xbf16, #tpu.memory_space<vmem>>, vector<1x128xbf16>
    tpu.vector_store %arg7[%c0_17, %c0_18], %29 {strides = array<i32>} : memref<1x128xbf16, #tpu.memory_space<vmem>>, vector<1x128xbf16>,
    return
  }
}

</mosaic_0001>

<llo_original>
// kernel: tpu_custom_call.1
$region0: #{tpu_custom_call.1}
  #allocation0 [shape = 'u32[]', space=smem, size = 0x4, offset = 0x4, fixed_abs, tag = 'smem constant byte address 0x4 - core index']
  #allocation1 [shape = 'u32[144,128]{1,0:T(1,128)}', space=vmem, size = 0x12000, scoped, tag = 'internal scratch']
  %s0 = inlined_call_operand.hbm [shape: bf16[1,1024], index: 0, kind: input, shape index: {}]
  %s1 = inlined_call_operand.hbm [shape: bf16[1024,256], index: 1, kind: input, shape index: {}]
  %s2 = inlined_call_operand.vmem [shape: f32[1,256], index: 2, kind: input, shape index: {}]
  %s3 = inlined_call_operand.hbm [shape: bf16[256,256], index: 3, kind: input, shape index: {}]
  %s4 = inlined_call_operand.vmem [shape: f32[1,256], index: 4, kind: input, shape index: {}]
  %s5 = inlined_call_operand.hbm [shape: bf16[256,128], index: 5, kind: input, shape index: {}]
  %s6 = inlined_call_operand.vmem [shape: f32[1,128], index: 6, kind: input, shape index: {}]
  %s7 = inlined_call_operand.hbm [shape: bf16[1,128], index: 7, kind: output, shape index: {}]
  %s8 = sld [smem:[#allocation0]]
  $region54: #{tpu_custom_call.1} parent=0
    _
  %s10 = ssub.s32 1, %s8
  %s11 = scalar_select 0, %s10, %s8
  $region1: #{tpu_custom_call.1} parent=0
    #allocation2 [shape = 'u8[4096]{0}', space=vmem, size = 0x1000, scoped, tag = 'input window, operand 0, single buffered']
    #allocation3 [shape = 's32[1]{0}', space=sflag, size = 0x4, scoped, tag = 'scoped memory for tpu_custom_call.1']
    #allocation4 [shape = 's32[1]{0}', space=sflag, size = 0x4, scoped, tag = 'scoped memory for tpu_custom_call.1']
    #allocation5 [shape = 'u8[524288]{0}', space=vmem, size = 0x80000, scoped, tag = 'input window, operand 1, single buffered']
    #allocation6 [shape = 's32[1]{0}', space=sflag, size = 0x4, scoped, tag = 'scoped memory for tpu_custom_call.1']
    #allocation7 [shape = 'u8[131072]{0}', space=vmem, size = 0x20000, scoped, tag = 'input window, operand 3, single buffered']
    #allocation8 [shape = 'u8[65536]{0}', space=vmem, size = 0x10000, scoped, tag = 'input window, operand 5, single buffered']
    #allocation9 [shape = 's32[1]{0}', space=sflag, size = 0x4, scoped, tag = 'scoped memory for tpu_custom_call.1']
    #allocation10 [shape = 'u8[512]{0}', space=vmem, size = 0x400, scoped, tag = 'output window, operand 0, single buffered']
    %12 = vsyncpa [#allocation3], 0
    %13 = vsyncpa [#allocation6], 0
    %14 = vsyncpa [#allocation9], 0
    %15 = vsyncpa [#allocation4], 0
    // Predicated region
    $region2: #{tpu_custom_call.1} parent=1 // pred_check
      _
    $region3: #{tpu_custom_call.1} parent=1 // pred_check_branch
      %17 = sbr.rel (0) target = $region5
    $region4: #{tpu_custom_call.1} parent=1 // pred_region
      %s19 = ssub.s32 128, 128
      %20 = vsyncadd [#allocation3], %s19
      %s22 = sshll.u32 [#allocation2], 4
      %s23 = int_to_ptr.vmem [resolvable:$true] %s22
      %25 = dma.hbm_to_vmem [thread:$0]  %s0, 128, %s23, [#allocation3]
    $region5: #{tpu_custom_call.1} parent=1 // pred_fallthru
      _
    // Predicated region
    $region6: #{tpu_custom_call.1} parent=1 // pred_check
      _
    $region7: #{tpu_custom_call.1} parent=1 // pred_check_branch
      %27 = sbr.rel (0) target = $region9
    $region8: #{tpu_custom_call.1} parent=1 // pred_region
      %s29 = ssub.s32 16384, 16384
      %30 = vsyncadd [#allocation6], %s29
      %s31 = sshll.u32 [#allocation5], 4
      %s32 = int_to_ptr.vmem [resolvable:$true] %s31
      %37 = dma.hbm_to_vmem [thread:$0]  %s1, 16384, %s32, [#allocation6], 128, 128, 8
    $region9: #{tpu_custom_call.1} parent=1 // pred_fallthru
      _
    // Predicated region
    $region10: #{tpu_custom_call.1} parent=1 // pred_check
      _
    $region11: #{tpu_custom_call.1} parent=1 // pred_check_branch
      %39 = sbr.rel (0) target = $region13
    $region12: #{tpu_custom_call.1} parent=1 // pred_region
      _
    $region13: #{tpu_custom_call.1} parent=1 // pred_fallthru
      _
    // Predicated region
    $region14: #{tpu_custom_call.1} parent=1 // pred_check
      _
    $region15: #{tpu_custom_call.1} parent=1 // pred_check_branch
      %41 = sbr.rel (0) target = $region17
    $region16: #{tpu_custom_call.1} parent=1 // pred_region
      %s43 = ssub.s32 4096, 4096
      %44 = vsyncadd [#allocation6], %s43
      %s45 = sshll.u32 [#allocation7], 4
      %s46 = int_to_ptr.vmem [resolvable:$true] %s45
      %51 = dma.hbm_to_vmem [thread:$0]  %s3, 4096, %s46, [#allocation6], 128, 128, 8
    $region17: #{tpu_custom_call.1} parent=1 // pred_fallthru
      _
    // Predicated region
    $region18: #{tpu_custom_call.1} parent=1 // pred_check
      _
    $region19: #{tpu_custom_call.1} parent=1 // pred_check_branch
      %53 = sbr.rel (0) target = $region21
    $region20: #{tpu_custom_call.1} parent=1 // pred_region
      _
    $region21: #{tpu_custom_call.1} parent=1 // pred_fallthru
      _
    // Predicated region
    $region22: #{tpu_custom_call.1} parent=1 // pred_check
      _
    $region23: #{tpu_custom_call.1} parent=1 // pred_check_branch
      %55 = sbr.rel (0) target = $region25
    $region24: #{tpu_custom_call.1} parent=1 // pred_region
      %s57 = ssub.s32 2048, 2048
      %58 = vsyncadd [#allocation9], %s57
      %s59 = sshll.u32 [#allocation8], 4
      %s60 = int_to_ptr.vmem [resolvable:$true] %s59
      %65 = dma.hbm_to_vmem [thread:$0]  %s5, 2048, %s60, [#allocation9], 64, 64, 4
    $region25: #{tpu_custom_call.1} parent=1 // pred_fallthru
      _
    // Predicated region
    $region26: #{tpu_custom_call.1} parent=1 // pred_check
      _
    $region27: #{tpu_custom_call.1} parent=1 // pred_check_branch
      %67 = sbr.rel (0) target = $region29
    $region28: #{tpu_custom_call.1} parent=1 // pred_region
      _
    $region29: #{tpu_custom_call.1} parent=1 // pred_fallthru
      _
    // Predicated region
    $region30: #{tpu_custom_call.1} parent=1 // pred_check
      _
    $region31: #{tpu_custom_call.1} parent=1 // pred_check_branch
      %69 = sbr.rel (0) target = $region33
    $region32: #{tpu_custom_call.1} parent=1 // pred_region
      %70 = dma.done [#allocation3], 128
    $region33: #{tpu_custom_call.1} parent=1 // pred_fallthru
      _
    // Predicated region
    $region34: #{tpu_custom_call.1} parent=1 // pred_check
      _
    $region35: #{tpu_custom_call.1} parent=1 // pred_check_branch
      %72 = sbr.rel (0) target = $region37
    $region36: #{tpu_custom_call.1} parent=1 // pred_region
      %73 = dma.done [#allocation6], 16384
    $region37: #{tpu_custom_call.1} parent=1 // pred_fallthru
      _
    // Predicated region
    $region38: #{tpu_custom_call.1} parent=1 // pred_check
      _
    $region39: #{tpu_custom_call.1} parent=1 // pred_check_branch
      %75 = sbr.rel (0) target = $region41
    $region40: #{tpu_custom_call.1} parent=1 // pred_region
      %76 = dma.done [#allocation6], 4096
    $region41: #{tpu_custom_call.1} parent=1 // pred_fallthru
      _
    // Predicated region
    $region42: #{tpu_custom_call.1} parent=1 // pred_check
      _
    $region43: #{tpu_custom_call.1} parent=1 // pred_check_branch
      %78 = sbr.rel (0) target = $region45
    $region44: #{tpu_custom_call.1} parent=1 // pred_region
      %79 = dma.done [#allocation9], 2048
    $region45: #{tpu_custom_call.1} parent=1 // pred_fallthru
      _
    %v81 = vld [vmem:[#allocation2] sm:$0xff]
    %v82 = vld [vmem:[#allocation5] sm:$0xff]
    %v83 = vld [vmem:[#allocation5 + $0x8] sm:$0xff]
    %v84 = vld [vmem:[#allocation5 + $0x10] sm:$0xff]
    %v85 = vld [vmem:[#allocation5 + $0x18] sm:$0xff]
    %v86 = vld [vmem:[#allocation5 + $0x20] sm:$0xff]
    %v87 = vld [vmem:[#allocation5 + $0x28] sm:$0xff]
    %v88 = vld [vmem:[#allocation5 + $0x30] sm:$0xff]
    %v89 = vld [vmem:[#allocation5 + $0x38] sm:$0xff]
    %v90 = vld [vmem:[#allocation5 + $0x40] sm:$0xff]
    %v91 = vld [vmem:[#allocation5 + $0x48] sm:$0xff]
    %v92 = vld [vmem:[#allocation5 + $0x50] sm:$0xff]
    %v93 = vld [vmem:[#allocation5 + $0x58] sm:$0xff]
    %v94 = vld [vmem:[#allocation5 + $0x60] sm:$0xff]
    %v95 = vld [vmem:[#allocation5 + $0x68] sm:$0xff]
    %v96 = vld [vmem:[#allocation5 + $0x70] sm:$0xff]
    %v97 = vld [vmem:[#allocation5 + $0x78] sm:$0xff]
    %v98 = vld [vmem:[#allocation5 + $0x80] sm:$0xff]
    %v99 = vld [vmem:[#allocation5 + $0x88] sm:$0xff]
    %v100 = vld [vmem:[#allocation5 + $0x90] sm:$0xff]
    %v101 = vld [vmem:[#allocation5 + $0x98] sm:$0xff]
    %v102 = vld [vmem:[#allocation5 + $0xa0] sm:$0xff]
    %v103 = vld [vmem:[#allocation5 + $0xa8] sm:$0xff]
    %v104 = vld [vmem:[#allocation5 + $0xb0] sm:$0xff]
    %v105 = vld [vmem:[#allocation5 + $0xb8] sm:$0xff]
    %v106 = vld [vmem:[#allocation5 + $0xc0] sm:$0xff]
    %v107 = vld [vmem:[#allocation5 + $0xc8] sm:$0xff]
    %v108 = vld [vmem:[#allocation5 + $0xd0] sm:$0xff]
    %v109 = vld [vmem:[#allocation5 + $0xd8] sm:$0xff]
    %v110 = vld [vmem:[#allocation5 + $0xe0] sm:$0xff]
    %v111 = vld [vmem:[#allocation5 + $0xe8] sm:$0xff]
    %v112 = vld [vmem:[#allocation5 + $0xf0] sm:$0xff]
    %v113 = vld [vmem:[#allocation5 + $0xf8] sm:$0xff]
    %v114 = vld [vmem:[#allocation5 + $0x100] sm:$0xff]
    %v115 = vld [vmem:[#allocation5 + $0x108] sm:$0xff]
    %v116 = vld [vmem:[#allocation5 + $0x110] sm:$0xff]
    %v117 = vld [vmem:[#allocation5 + $0x118] sm:$0xff]
    %v118 = vld [vmem:[#allocation5 + $0x120] sm:$0xff]
    %v119 = vld [vmem:[#allocation5 + $0x128] sm:$0xff]
    %v120 = vld [vmem:[#allocation5 + $0x130] sm:$0xff]
    %v121 = vld [vmem:[#allocation5 + $0x138] sm:$0xff]
    %v122 = vld [vmem:[#allocation5 + $0x140] sm:$0xff]
    %v123 = vld [vmem:[#allocation5 + $0x148] sm:$0xff]
    %v124 = vld [vmem:[#allocation5 + $0x150] sm:$0xff]
    %v125 = vld [vmem:[#allocation5 + $0x158] sm:$0xff]
    %v126 = vld [vmem:[#allocation5 + $0x160] sm:$0xff]
    %v127 = vld [vmem:[#allocation5 + $0x168] sm:$0xff]
    %v128 = vld [vmem:[#allocation5 + $0x170] sm:$0xff]
    %v129 = vld [vmem:[#allocation5 + $0x178] sm:$0xff]
    %v130 = vld [vmem:[#allocation5 + $0x180] sm:$0xff]
    %v131 = vld [vmem:[#allocation5 + $0x188] sm:$0xff]
    %v132 = vld [vmem:[#allocation5 + $0x190] sm:$0xff]
    %v133 = vld [vmem:[#allocation5 + $0x198] sm:$0xff]
    %v134 = vld [vmem:[#allocation5 + $0x1a0] sm:$0xff]
    %v135 = vld [vmem:[#allocation5 + $0x1a8] sm:$0xff]
    %v136 = vld [vmem:[#allocation5 + $0x1b0] sm:$0xff]
    %v137 = vld [vmem:[#allocation5 + $0x1b8] sm:$0xff]
    %v138 = vld [vmem:[#allocation5 + $0x1c0] sm:$0xff]
    %v139 = vld [vmem:[#allocation5 + $0x1c8] sm:$0xff]
    %v140 = vld [vmem:[#allocation5 + $0x1d0] sm:$0xff]
    %v141 = vld [vmem:[#allocation5 + $0x1d8] sm:$0xff]
    %v142 = vld [vmem:[#allocation5 + $0x1e0] sm:$0xff]
    %v143 = vld [vmem:[#allocation5 + $0x1e8] sm:$0xff]
    %v144 = vld [vmem:[#allocation5 + $0x1f0] sm:$0xff]
    %v145 = vld [vmem:[#allocation5 + $0x1f8] sm:$0xff]
    %v146 = vld [vmem:[#allocation5 + $0x200] sm:$0xff]
    %v147 = vld [vmem:[#allocation5 + $0x208] sm:$0xff]
    %v148 = vld [vmem:[#allocation5 + $0x210] sm:$0xff]
    %v149 = vld [vmem:[#allocation5 + $0x218] sm:$0xff]
    %v150 = vld [vmem:[#allocation5 + $0x220] sm:$0xff]
    %v151 = vld [vmem:[#allocation5 + $0x228] sm:$0xff]
    %v152 = vld [vmem:[#allocation5 + $0x230] sm:$0xff]
    %v153 = vld [vmem:[#allocation5 + $0x238] sm:$0xff]
    %v154 = vld [vmem:[#allocation5 + $0x240] sm:$0xff]
    %v155 = vld [vmem:[#allocation5 + $0x248] sm:$0xff]
    %v156 = vld [vmem:[#allocation5 + $0x250] sm:$0xff]
    %v157 = vld [vmem:[#allocation5 + $0x258] sm:$0xff]
    %v158 = vld [vmem:[#allocation5 + $0x260] sm:$0xff]
    %v159 = vld [vmem:[#allocation5 + $0x268] sm:$0xff]
    %v160 = vld [vmem:[#allocation5 + $0x270] sm:$0xff]
    %v161 = vld [vmem:[#allocation5 + $0x278] sm:$0xff]
    %v162 = vld [vmem:[#allocation5 + $0x280] sm:$0xff]
    %v163 = vld [vmem:[#allocation5 + $0x288] sm:$0xff]
    %v164 = vld [vmem:[#allocation5 + $0x290] sm:$0xff]
    %v165 = vld [vmem:[#allocation5 + $0x298] sm:$0xff]
    %v166 = vld [vmem:[#allocation5 + $0x2a0] sm:$0xff]
    %v167 = vld [vmem:[#allocation5 + $0x2a8] sm:$0xff]
    %v168 = vld [vmem:[#allocation5 + $0x2b0] sm:$0xff]
    %v169 = vld [vmem:[#allocation5 + $0x2b8] sm:$0xff]
    %v170 = vld [vmem:[#allocation5 + $0x2c0] sm:$0xff]
    %v171 = vld [vmem:[#allocation5 + $0x2c8] sm:$0xff]
    %v172 = vld [vmem:[#allocation5 + $0x2d0] sm:$0xff]
    %v173 = vld [vmem:[#allocation5 + $0x2d8] sm:$0xff]
    %v174 = vld [vmem:[#allocation5 + $0x2e0] sm:$0xff]
    %v175 = vld [vmem:[#allocation5 + $0x2e8] sm:$0xff]
    %v176 = vld [vmem:[#allocation5 + $0x2f0] sm:$0xff]
    %v177 = vld [vmem:[#allocation5 + $0x2f8] sm:$0xff]
    %v178 = vld [vmem:[#allocation5 + $0x300] sm:$0xff]
    %v179 = vld [vmem:[#allocation5 + $0x308] sm:$0xff]
    %v180 = vld [vmem:[#allocation5 + $0x310] sm:$0xff]
    %v181 = vld [vmem:[#allocation5 + $0x318] sm:$0xff]
    %v182 = vld [vmem:[#allocation5 + $0x320] sm:$0xff]
    %v183 = vld [vmem:[#allocation5 + $0x328] sm:$0xff]
    %v184 = vld [vmem:[#allocation5 + $0x330] sm:$0xff]
    %v185 = vld [vmem:[#allocation5 + $0x338] sm:$0xff]
    %v186 = vld [vmem:[#allocation5 + $0x340] sm:$0xff]
    %v187 = vld [vmem:[#allocation5 + $0x348] sm:$0xff]
    %v188 = vld [vmem:[#allocation5 + $0x350] sm:$0xff]
    %v189 = vld [vmem:[#allocation5 + $0x358] sm:$0xff]
    %v190 = vld [vmem:[#allocation5 + $0x360] sm:$0xff]
    %v191 = vld [vmem:[#allocation5 + $0x368] sm:$0xff]
    %v192 = vld [vmem:[#allocation5 + $0x370] sm:$0xff]
    %v193 = vld [vmem:[#allocation5 + $0x378] sm:$0xff]
    %v194 = vld [vmem:[#allocation5 + $0x380] sm:$0xff]
    %v195 = vld [vmem:[#allocation5 + $0x388] sm:$0xff]
    %v196 = vld [vmem:[#allocation5 + $0x390] sm:$0xff]
    %v197 = vld [vmem:[#allocation5 + $0x398] sm:$0xff]
    %v198 = vld [vmem:[#allocation5 + $0x3a0] sm:$0xff]
    %v199 = vld [vmem:[#allocation5 + $0x3a8] sm:$0xff]
    %v200 = vld [vmem:[#allocation5 + $0x3b0] sm:$0xff]
    %v201 = vld [vmem:[#allocation5 + $0x3b8] sm:$0xff]
    %v202 = vld [vmem:[#allocation5 + $0x3c0] sm:$0xff]
    %v203 = vld [vmem:[#allocation5 + $0x3c8] sm:$0xff]
    %v204 = vld [vmem:[#allocation5 + $0x3d0] sm:$0xff]
    %v205 = vld [vmem:[#allocation5 + $0x3d8] sm:$0xff]
    %v206 = vld [vmem:[#allocation5 + $0x3e0] sm:$0xff]
    %v207 = vld [vmem:[#allocation5 + $0x3e8] sm:$0xff]
    %v208 = vld [vmem:[#allocation5 + $0x3f0] sm:$0xff]
    %v209 = vld [vmem:[#allocation5 + $0x3f8] sm:$0xff]
    %v210 = vld [vmem:[%s2] sm:$0x3]
    %v212 = vcombine.high %v81, %v81
    %v214 = vunpack.c.l.s4 1966171168
    %v215 = vunpack.c.0.s8 %v214
    %v216 = vlaneseq
    %v217 = vshrl.u32 %v216, 7
    %v218 = vsub.s32 %v215, %v217
    %v219 = vrot.slane %v81, %v218
    %v221 = vunpack.c.l.s4 1966171168
    %v222 = vunpack.c.0.s8 %v221
    %v223 = vlaneseq
    %v224 = vshrl.u32 %v223, 7
    %v225 = vsub.s32 %v222, %v224
    %v226 = vrot.slane %v212, %v225
    %v227 = vcombine.high %v219, %v219
    %v228 = vcombine.high %v226, %v226
    %v230 = vunpack.c.l.s4 1966171168
    %v231 = vunpack.c.0.s8 %v230
    %v232 = vlaneseq
    %v233 = vshrl.u32 %v232, 7
    %v234 = vsub.s32 %v231, %v233
    %v235 = vrot.slane %v219, %v234
    %v237 = vunpack.c.l.s4 1966171168
    %v238 = vunpack.c.0.s8 %v237
    %v239 = vlaneseq
    %v240 = vshrl.u32 %v239, 7
    %v241 = vsub.s32 %v238, %v240
    %v242 = vrot.slane %v226, %v241
    %v244 = vunpack.c.l.s4 1966171168
    %v245 = vunpack.c.0.s8 %v244
    %v246 = vlaneseq
    %v247 = vshrl.u32 %v246, 7
    %v248 = vsub.s32 %v245, %v247
    %v249 = vrot.slane %v227, %v248
    %v251 = vunpack.c.l.s4 1966171168
    %v252 = vunpack.c.0.s8 %v251
    %v253 = vlaneseq
    %v254 = vshrl.u32 %v253, 7
    %v255 = vsub.s32 %v252, %v254
    %v256 = vrot.slane %v228, %v255
    %v257 = vcombine.high %v235, %v235
    %v258 = vcombine.high %v242, %v242
    %v259 = vcombine.high %v249, %v249
    %v260 = vcombine.high %v256, %v256
    %v397 = vunpack.c.l.b16 %v82
    %v398 = vunpack.c.h.b16 %v82
    %v399 = vunpack.c.l.b16 %v83
    %v400 = vunpack.c.h.b16 %v83
    %v401 = vunpack.c.l.b16 %v84
    %v402 = vunpack.c.h.b16 %v84
    %v403 = vunpack.c.l.b16 %v85
    %v404 = vunpack.c.h.b16 %v85
    %v405 = vunpack.c.l.b16 %v86
    %v406 = vunpack.c.h.b16 %v86
    %v407 = vunpack.c.l.b16 %v87
    %v408 = vunpack.c.h.b16 %v87
    %v409 = vunpack.c.l.b16 %v88
    %v410 = vunpack.c.h.b16 %v88
    %v411 = vunpack.c.l.b16 %v89
    %v412 = vunpack.c.h.b16 %v89
    %v413 = vunpack.c.l.b16 %v90
    %v414 = vunpack.c.h.b16 %v90
    %v415 = vunpack.c.l.b16 %v91
    %v416 = vunpack.c.h.b16 %v91
    %v417 = vunpack.c.l.b16 %v92
    %v418 = vunpack.c.h.b16 %v92
    %v419 = vunpack.c.l.b16 %v93
    %v420 = vunpack.c.h.b16 %v93
    %v421 = vunpack.c.l.b16 %v94
    %v422 = vunpack.c.h.b16 %v94
    %v423 = vunpack.c.l.b16 %v95
    %v424 = vunpack.c.h.b16 %v95
    %v425 = vunpack.c.l.b16 %v96
    %v426 = vunpack.c.h.b16 %v96
    %v427 = vunpack.c.l.b16 %v97
    %v428 = vunpack.c.h.b16 %v97
    %v429 = vunpack.c.l.b16 %v98
    %v430 = vunpack.c.h.b16 %v98
    %v431 = vunpack.c.l.b16 %v99
    %v432 = vunpack.c.h.b16 %v99
    %v433 = vunpack.c.l.b16 %v100
    %v434 = vunpack.c.h.b16 %v100
    %v435 = vunpack.c.l.b16 %v101
    %v436 = vunpack.c.h.b16 %v101
    %v437 = vunpack.c.l.b16 %v102
    %v438 = vunpack.c.h.b16 %v102
    %v439 = vunpack.c.l.b16 %v103
    %v440 = vunpack.c.h.b16 %v103
    %v441 = vunpack.c.l.b16 %v104
    %v442 = vunpack.c.h.b16 %v104
    %v443 = vunpack.c.l.b16 %v105
    %v444 = vunpack.c.h.b16 %v105
    %v445 = vunpack.c.l.b16 %v106
    %v446 = vunpack.c.h.b16 %v106
    %v447 = vunpack.c.l.b16 %v107
    %v448 = vunpack.c.h.b16 %v107
    %v449 = vunpack.c.l.b16 %v108
    %v450 = vunpack.c.h.b16 %v108
    %v451 = vunpack.c.l.b16 %v109
    %v452 = vunpack.c.h.b16 %v109
    %v453 = vunpack.c.l.b16 %v110
    %v454 = vunpack.c.h.b16 %v110
    %v455 = vunpack.c.l.b16 %v111
    %v456 = vunpack.c.h.b16 %v111
    %v457 = vunpack.c.l.b16 %v112
    %v458 = vunpack.c.h.b16 %v112
    %v459 = vunpack.c.l.b16 %v113
    %v460 = vunpack.c.h.b16 %v113
    %v461 = vunpack.c.l.b16 %v114
    %v462 = vunpack.c.h.b16 %v114
    %v463 = vunpack.c.l.b16 %v115
    %v464 = vunpack.c.h.b16 %v115
    %v465 = vunpack.c.l.b16 %v116
    %v466 = vunpack.c.h.b16 %v116
    %v467 = vunpack.c.l.b16 %v117
    %v468 = vunpack.c.h.b16 %v117
    %v469 = vunpack.c.l.b16 %v118
    %v470 = vunpack.c.h.b16 %v118
    %v471 = vunpack.c.l.b16 %v119
    %v472 = vunpack.c.h.b16 %v119
    %v473 = vunpack.c.l.b16 %v120
    %v474 = vunpack.c.h.b16 %v120
    %v475 = vunpack.c.l.b16 %v121
    %v476 = vunpack.c.h.b16 %v121
    %v477 = vunpack.c.l.b16 %v122
    %v478 = vunpack.c.h.b16 %v122
    %v479 = vunpack.c.l.b16 %v123
    %v480 = vunpack.c.h.b16 %v123
    %v481 = vunpack.c.l.b16 %v124
    %v482 = vunpack.c.h.b16 %v124
    %v483 = vunpack.c.l.b16 %v125
    %v484 = vunpack.c.h.b16 %v125
    %v485 = vunpack.c.l.b16 %v126
    %v486 = vunpack.c.h.b16 %v126
    %v487 = vunpack.c.l.b16 %v127
    %v488 = vunpack.c.h.b16 %v127
    %v489 = vunpack.c.l.b16 %v128
    %v490 = vunpack.c.h.b16 %v128
    %v491 = vunpack.c.l.b16 %v129
    %v492 = vunpack.c.h.b16 %v129
    %v493 = vunpack.c.l.b16 %v130
    %v494 = vunpack.c.h.b16 %v130
    %v495 = vunpack.c.l.b16 %v131
    %v496 = vunpack.c.h.b16 %v131
    %v497 = vunpack.c.l.b16 %v132
    %v498 = vunpack.c.h.b16 %v132
    %v499 = vunpack.c.l.b16 %v133
    %v500 = vunpack.c.h.b16 %v133
    %v501 = vunpack.c.l.b16 %v134
    %v502 = vunpack.c.h.b16 %v134
    %v503 = vunpack.c.l.b16 %v135
    %v504 = vunpack.c.h.b16 %v135
    %v505 = vunpack.c.l.b16 %v136
    %v506 = vunpack.c.h.b16 %v136
    %v507 = vunpack.c.l.b16 %v137
    %v508 = vunpack.c.h.b16 %v137
    %v509 = vunpack.c.l.b16 %v138
    %v510 = vunpack.c.h.b16 %v138
    %v511 = vunpack.c.l.b16 %v139
    %v512 = vunpack.c.h.b16 %v139
    %v513 = vunpack.c.l.b16 %v140
    %v514 = vunpack.c.h.b16 %v140
    %v515 = vunpack.c.l.b16 %v141
    %v516 = vunpack.c.h.b16 %v141
    %v517 = vunpack.c.l.b16 %v142
    %v518 = vunpack.c.h.b16 %v142
    %v519 = vunpack.c.l.b16 %v143
    %v520 = vunpack.c.h.b16 %v143
    %v521 = vunpack.c.l.b16 %v144
    %v522 = vunpack.c.h.b16 %v144
    %v523 = vunpack.c.l.b16 %v145
    %v524 = vunpack.c.h.b16 %v145
    %v525 = vunpack.c.l.b16 %v146
    %v526 = vunpack.c.h.b16 %v146
    %v527 = vunpack.c.l.b16 %v147
    %v528 = vunpack.c.h.b16 %v147
    %v529 = vunpack.c.l.b16 %v148
    %v530 = vunpack.c.h.b16 %v148
    %v531 = vunpack.c.l.b16 %v149
    %v532 = vunpack.c.h.b16 %v149
    %v533 = vunpack.c.l.b16 %v150
    %v534 = vunpack.c.h.b16 %v150
    %v535 = vunpack.c.l.b16 %v151
    %v536 = vunpack.c.h.b16 %v151
    %v537 = vunpack.c.l.b16 %v152
    %v538 = vunpack.c.h.b16 %v152
    %v539 = vunpack.c.l.b16 %v153
    %v540 = vunpack.c.h.b16 %v153
    %v541 = vunpack.c.l.b16 %v154
    %v542 = vunpack.c.h.b16 %v154
    %v543 = vunpack.c.l.b16 %v155
    %v544 = vunpack.c.h.b16 %v155
    %v545 = vunpack.c.l.b16 %v156
    %v546 = vunpack.c.h.b16 %v156
    %v547 = vunpack.c.l.b16 %v157
    %v548 = vunpack.c.h.b16 %v157
    %v549 = vunpack.c.l.b16 %v158
    %v550 = vunpack.c.h.b16 %v158
    %v551 = vunpack.c.l.b16 %v159
    %v552 = vunpack.c.h.b16 %v159
    %v553 = vunpack.c.l.b16 %v160
    %v554 = vunpack.c.h.b16 %v160
    %v555 = vunpack.c.l.b16 %v161
    %v556 = vunpack.c.h.b16 %v161
    %v557 = vunpack.c.l.b16 %v162
    %v558 = vunpack.c.h.b16 %v162
    %v559 = vunpack.c.l.b16 %v163
    %v560 = vunpack.c.h.b16 %v163
    %v561 = vunpack.c.l.b16 %v164
    %v562 = vunpack.c.h.b16 %v164
    %v563 = vunpack.c.l.b16 %v165
    %v564 = vunpack.c.h.b16 %v165
    %v565 = vunpack.c.l.b16 %v166
    %v566 = vunpack.c.h.b16 %v166
    %v567 = vunpack.c.l.b16 %v167
    %v568 = vunpack.c.h.b16 %v167
    %v569 = vunpack.c.l.b16 %v168
    %v570 = vunpack.c.h.b16 %v168
    %v571 = vunpack.c.l.b16 %v169
    %v572 = vunpack.c.h.b16 %v169
    %v573 = vunpack.c.l.b16 %v170
    %v574 = vunpack.c.h.b16 %v170
    %v575 = vunpack.c.l.b16 %v171
    %v576 = vunpack.c.h.b16 %v171
    %v577 = vunpack.c.l.b16 %v172
    %v578 = vunpack.c.h.b16 %v172
    %v579 = vunpack.c.l.b16 %v173
    %v580 = vunpack.c.h.b16 %v173
    %v581 = vunpack.c.l.b16 %v174
    %v582 = vunpack.c.h.b16 %v174
    %v583 = vunpack.c.l.b16 %v175
    %v584 = vunpack.c.h.b16 %v175
    %v585 = vunpack.c.l.b16 %v176
    %v586 = vunpack.c.h.b16 %v176
    %v587 = vunpack.c.l.b16 %v177
    %v588 = vunpack.c.h.b16 %v177
    %v589 = vunpack.c.l.b16 %v178
    %v590 = vunpack.c.h.b16 %v178
    %v591 = vunpack.c.l.b16 %v179
    %v592 = vunpack.c.h.b16 %v179
    %v593 = vunpack.c.l.b16 %v180
    %v594 = vunpack.c.h.b16 %v180
    %v595 = vunpack.c.l.b16 %v181
    %v596 = vunpack.c.h.b16 %v181
    %v597 = vunpack.c.l.b16 %v182
    %v598 = vunpack.c.h.b16 %v182
    %v599 = vunpack.c.l.b16 %v183
    %v600 = vunpack.c.h.b16 %v183
    %v601 = vunpack.c.l.b16 %v184
    %v602 = vunpack.c.h.b16 %v184
    %v603 = vunpack.c.l.b16 %v185
    %v604 = vunpack.c.h.b16 %v185
    %v605 = vunpack.c.l.b16 %v186
    %v606 = vunpack.c.h.b16 %v186
    %v607 = vunpack.c.l.b16 %v187
    %v608 = vunpack.c.h.b16 %v187
    %v609 = vunpack.c.l.b16 %v188
    %v610 = vunpack.c.h.b16 %v188
    %v611 = vunpack.c.l.b16 %v189
    %v612 = vunpack.c.h.b16 %v189
    %v613 = vunpack.c.l.b16 %v190
    %v614 = vunpack.c.h.b16 %v190
    %v615 = vunpack.c.l.b16 %v191
    %v616 = vunpack.c.h.b16 %v191
    %v617 = vunpack.c.l.b16 %v192
    %v618 = vunpack.c.h.b16 %v192
    %v619 = vunpack.c.l.b16 %v193
    %v620 = vunpack.c.h.b16 %v193
    %v621 = vunpack.c.l.b16 %v194
    %v622 = vunpack.c.h.b16 %v194
    %v623 = vunpack.c.l.b16 %v195
    %v624 = vunpack.c.h.b16 %v195
    %v625 = vunpack.c.l.b16 %v196
    %v626 = vunpack.c.h.b16 %v196
    %v627 = vunpack.c.l.b16 %v197
    %v628 = vunpack.c.h.b16 %v197
    %v629 = vunpack.c.l.b16 %v198
    %v630 = vunpack.c.h.b16 %v198
    %v631 = vunpack.c.l.b16 %v199
    %v632 = vunpack.c.h.b16 %v199
    %v633 = vunpack.c.l.b16 %v200
    %v634 = vunpack.c.h.b16 %v200
    %v635 = vunpack.c.l.b16 %v201
    %v636 = vunpack.c.h.b16 %v201
    %v637 = vunpack.c.l.b16 %v202
    %v638 = vunpack.c.h.b16 %v202
    %v639 = vunpack.c.l.b16 %v203
    %v640 = vunpack.c.h.b16 %v203
    %v641 = vunpack.c.l.b16 %v204
    %v642 = vunpack.c.h.b16 %v204
    %v643 = vunpack.c.l.b16 %v205
    %v644 = vunpack.c.h.b16 %v205
    %v645 = vunpack.c.l.b16 %v206
    %v646 = vunpack.c.h.b16 %v206
    %v647 = vunpack.c.l.b16 %v207
    %v648 = vunpack.c.h.b16 %v207
    %v649 = vunpack.c.l.b16 %v208
    %v650 = vunpack.c.h.b16 %v208
    %v651 = vunpack.c.l.b16 %v209
    %v652 = vunpack.c.h.b16 %v209
    %v653 = vpack.c.b16 %v399, %v397
    %v654 = vpack.c.b16 %v400, %v398
    %v655 = vpack.c.b16 %v403, %v401
    %v656 = vpack.c.b16 %v404, %v402
    %v657 = vpack.c.b16 %v407, %v405
    %v658 = vpack.c.b16 %v408, %v406
    %v659 = vpack.c.b16 %v411, %v409
    %v660 = vpack.c.b16 %v412, %v410
    %v661 = vpack.c.b16 %v415, %v413
    %v662 = vpack.c.b16 %v416, %v414
    %v663 = vpack.c.b16 %v419, %v417
    %v664 = vpack.c.b16 %v420, %v418
    %v665 = vpack.c.b16 %v423, %v421
    %v666 = vpack.c.b16 %v424, %v422
    %v667 = vpack.c.b16 %v427, %v425
    %v668 = vpack.c.b16 %v428, %v426
    %v669 = vpack.c.b16 %v431, %v429
    %v670 = vpack.c.b16 %v432, %v430
    %v671 = vpack.c.b16 %v435, %v433
    %v672 = vpack.c.b16 %v436, %v434
    %v673 = vpack.c.b16 %v439, %v437
    %v674 = vpack.c.b16 %v440, %v438
    %v675 = vpack.c.b16 %v443, %v441
    %v676 = vpack.c.b16 %v444, %v442
    %v677 = vpack.c.b16 %v447, %v445
    %v678 = vpack.c.b16 %v448, %v446
    %v679 = vpack.c.b16 %v451, %v449
    %v680 = vpack.c.b16 %v452, %v450
    %v681 = vpack.c.b16 %v455, %v453
    %v682 = vpack.c.b16 %v456, %v454
    %v683 = vpack.c.b16 %v459, %v457
    %v684 = vpack.c.b16 %v460, %v458
    %v685 = vpack.c.b16 %v463, %v461
    %v686 = vpack.c.b16 %v464, %v462
    %v687 = vpack.c.b16 %v467, %v465
    %v688 = vpack.c.b16 %v468, %v466
    %v689 = vpack.c.b16 %v471, %v469
    %v690 = vpack.c.b16 %v472, %v470
    %v691 = vpack.c.b16 %v475, %v473
    %v692 = vpack.c.b16 %v476, %v474
    %v693 = vpack.c.b16 %v479, %v477
    %v694 = vpack.c.b16 %v480, %v478
    %v695 = vpack.c.b16 %v483, %v481
    %v696 = vpack.c.b16 %v484, %v482
    %v697 = vpack.c.b16 %v487, %v485
    %v698 = vpack.c.b16 %v488, %v486
    %v699 = vpack.c.b16 %v491, %v489
    %v700 = vpack.c.b16 %v492, %v490
    %v701 = vpack.c.b16 %v495, %v493
    %v702 = vpack.c.b16 %v496, %v494
    %v703 = vpack.c.b16 %v499, %v497
    %v704 = vpack.c.b16 %v500, %v498
    %v705 = vpack.c.b16 %v503, %v501
    %v706 = vpack.c.b16 %v504, %v502
    %v707 = vpack.c.b16 %v507, %v505
    %v708 = vpack.c.b16 %v508, %v506
    %v709 = vpack.c.b16 %v511, %v509
    %v710 = vpack.c.b16 %v512, %v510
    %v711 = vpack.c.b16 %v515, %v513
    %v712 = vpack.c.b16 %v516, %v514
    %v713 = vpack.c.b16 %v519, %v517
    %v714 = vpack.c.b16 %v520, %v518
    %v715 = vpack.c.b16 %v523, %v521
    %v716 = vpack.c.b16 %v524, %v522
    %v717 = vpack.c.b16 %v527, %v525
    %v718 = vpack.c.b16 %v528, %v526
    %v719 = vpack.c.b16 %v531, %v529
    %v720 = vpack.c.b16 %v532, %v530
    %v721 = vpack.c.b16 %v535, %v533
    %v722 = vpack.c.b16 %v536, %v534
    %v723 = vpack.c.b16 %v539, %v537
    %v724 = vpack.c.b16 %v540, %v538
    %v725 = vpack.c.b16 %v543, %v541
    %v726 = vpack.c.b16 %v544, %v542
    %v727 = vpack.c.b16 %v547, %v545
    %v728 = vpack.c.b16 %v548, %v546
    %v729 = vpack.c.b16 %v551, %v549
    %v730 = vpack.c.b16 %v552, %v550
    %v731 = vpack.c.b16 %v555, %v553
    %v732 = vpack.c.b16 %v556, %v554
    %v733 = vpack.c.b16 %v559, %v557
    %v734 = vpack.c.b16 %v560, %v558
    %v735 = vpack.c.b16 %v563, %v561
    %v736 = vpack.c.b16 %v564, %v562
    %v737 = vpack.c.b16 %v567, %v565
    %v738 = vpack.c.b16 %v568, %v566
    %v739 = vpack.c.b16 %v571, %v569
    %v740 = vpack.c.b16 %v572, %v570
    %v741 = vpack.c.b16 %v575, %v573
    %v742 = vpack.c.b16 %v576, %v574
    %v743 = vpack.c.b16 %v579, %v577
    %v744 = vpack.c.b16 %v580, %v578
    %v745 = vpack.c.b16 %v583, %v581
    %v746 = vpack.c.b16 %v584, %v582
    %v747 = vpack.c.b16 %v587, %v585
    %v748 = vpack.c.b16 %v588, %v586
    %v749 = vpack.c.b16 %v591, %v589
    %v750 = vpack.c.b16 %v592, %v590
    %v751 = vpack.c.b16 %v595, %v593
    %v752 = vpack.c.b16 %v596, %v594
    %v753 = vpack.c.b16 %v599, %v597
    %v754 = vpack.c.b16 %v600, %v598
    %v755 = vpack.c.b16 %v603, %v601
    %v756 = vpack.c.b16 %v604, %v602
    %v757 = vpack.c.b16 %v607, %v605
    %v758 = vpack.c.b16 %v608, %v606
    %v759 = vpack.c.b16 %v611, %v609
    %v760 = vpack.c.b16 %v612, %v610
    %v761 = vpack.c.b16 %v615, %v613
    %v762 = vpack.c.b16 %v616, %v614
    %v763 = vpack.c.b16 %v619, %v617
    %v764 = vpack.c.b16 %v620, %v618
    %v765 = vpack.c.b16 %v623, %v621
    %v766 = vpack.c.b16 %v624, %v622
    %v767 = vpack.c.b16 %v627, %v625
    %v768 = vpack.c.b16 %v628, %v626
    %v769 = vpack.c.b16 %v631, %v629
    %v770 = vpack.c.b16 %v632, %v630
    %v771 = vpack.c.b16 %v635, %v633
    %v772 = vpack.c.b16 %v636, %v634
    %v773 = vpack.c.b16 %v639, %v637
    %v774 = vpack.c.b16 %v640, %v638
    %v775 = vpack.c.b16 %v643, %v641
    %v776 = vpack.c.b16 %v644, %v642
    %v777 = vpack.c.b16 %v647, %v645
    %v778 = vpack.c.b16 %v648, %v646
    %v779 = vpack.c.b16 %v651, %v649
    %v780 = vpack.c.b16 %v652, %v650
    %v910 = vlaneseq
    %v911 = vshrl.u32 %v910, 7
    %v912 = vsub.s32 0, %v911
    %v913 = vrot.slane %v210, %v912
    %v914 = vlaneseq
    %v915 = vshrl.u32 %v914, 7
    %v916 = vsub.s32 1, %v915
    %v917 = vrot.slane %v210, %v916
    %920 = vmatprep.subr.bf16.mxu0 %v654
    %921 = vmatpush1.bf16.msra.mxu0 %v653
    %922 = vmatprep.subr.bf16.mxu0 %v656
    %923 = vmatpush1.bf16.msra.mxu0 %v655
    %924 = vmatprep.subr.bf16.mxu0 %v658
    %925 = vmatpush1.bf16.msra.mxu0 %v657
    %926 = vmatprep.subr.bf16.mxu0 %v660
    %927 = vmatpush1.bf16.msra.mxu0 %v659
    %928 = vmatprep.subr.bf16.mxu0 %v662
    %929 = vmatpush1.bf16.msra.mxu0 %v661
    %930 = vmatprep.subr.bf16.mxu0 %v664
    %931 = vmatpush1.bf16.msra.mxu0 %v663
    %932 = vmatprep.subr.bf16.mxu0 %v666
    %933 = vmatpush1.bf16.msra.mxu0 %v665
    %934 = vmatprep.subr.bf16.mxu0 %v668
    %935 = vmatpush1.bf16.msra.mxu0 %v667
    %936 = vmatprep.subr.bf16.mxu0 %v670
    %937 = vmatpush1.bf16.msra.mxu0 %v669
    %938 = vmatprep.subr.bf16.mxu0 %v672
    %939 = vmatpush1.bf16.msra.mxu0 %v671
    %940 = vmatprep.subr.bf16.mxu0 %v674
    %941 = vmatpush1.bf16.msra.mxu0 %v673
    %942 = vmatprep.subr.bf16.mxu0 %v676
    %943 = vmatpush1.bf16.msra.mxu0 %v675
    %944 = vmatprep.subr.bf16.mxu0 %v678
    %945 = vmatpush1.bf16.msra.mxu0 %v677
    %946 = vmatprep.subr.bf16.mxu0 %v680
    %947 = vmatpush1.bf16.msra.mxu0 %v679
    %948 = vmatprep.subr.bf16.mxu0 %v682
    %949 = vmatpush1.bf16.msra.mxu0 %v681
    %950 = vmatprep.subr.bf16.mxu0 %v684
    %951 = vmatpush1.bf16.msra.mxu0 %v683
    %952 = vmatprep.mubr.bf16.mxu0 %v249
    %953 = vmatmul.mubr.bf16.gmra.mrb[0].mxu0 %v235
    %v954 = vpop.f32.mrb[0].mxu0
    %v955 = vadd.f32 %v913, %v954
    %v956 = vpop.f32.mrb[0].mxu0
    %v957 = vadd.f32 %v917, %v956
    %v958 = vpop.f32.mrb[0].mxu0
    %v959 = vpop.f32.mrb[0].mxu0
    %960 = vdwg.mxu0
    %961 = vmatprep.subr.bf16.mxu0 %v686
    %962 = vmatpush1.bf16.msra.mxu0 %v685
    %963 = vmatprep.subr.bf16.mxu0 %v688
    %964 = vmatpush1.bf16.msra.mxu0 %v687
    %965 = vmatprep.subr.bf16.mxu0 %v690
    %966 = vmatpush1.bf16.msra.mxu0 %v689
    %967 = vmatprep.subr.bf16.mxu0 %v692
    %968 = vmatpush1.bf16.msra.mxu0 %v691
    %969 = vmatprep.subr.bf16.mxu0 %v694
    %970 = vmatpush1.bf16.msra.mxu0 %v693
    %971 = vmatprep.subr.bf16.mxu0 %v696
    %972 = vmatpush1.bf16.msra.mxu0 %v695
    %973 = vmatprep.subr.bf16.mxu0 %v698
    %974 = vmatpush1.bf16.msra.mxu0 %v697
    %975 = vmatprep.subr.bf16.mxu0 %v700
    %976 = vmatpush1.bf16.msra.mxu0 %v699
    %977 = vmatprep.subr.bf16.mxu0 %v702
    %978 = vmatpush1.bf16.msra.mxu0 %v701
    %979 = vmatprep.subr.bf16.mxu0 %v704
    %980 = vmatpush1.bf16.msra.mxu0 %v703
    %981 = vmatprep.subr.bf16.mxu0 %v706
    %982 = vmatpush1.bf16.msra.mxu0 %v705
    %983 = vmatprep.subr.bf16.mxu0 %v708
    %984 = vmatpush1.bf16.msra.mxu0 %v707
    %985 = vmatprep.subr.bf16.mxu0 %v710
    %986 = vmatpush1.bf16.msra.mxu0 %v709
    %987 = vmatprep.subr.bf16.mxu0 %v712
    %988 = vmatpush1.bf16.msra.mxu0 %v711
    %989 = vmatprep.subr.bf16.mxu0 %v714
    %990 = vmatpush1.bf16.msra.mxu0 %v713
    %991 = vmatprep.subr.bf16.mxu0 %v716
    %992 = vmatpush1.bf16.msra.mxu0 %v715
    %993 = vmatprep.mubr.bf16.mxu0 %v259
    %994 = vmatmul.mubr.bf16.gmra.mrb[0].mxu0 %v257
    %v995 = vpop.f32.mrb[0].mxu0
    %v996 = vadd.f32 %v955, %v995
    %v997 = vpop.f32.mrb[0].mxu0
    %v998 = vadd.f32 %v957, %v997
    %v999 = vpop.f32.mrb[0].mxu0
    %v1000 = vpop.f32.mrb[0].mxu0
    %1001 = vdwg.mxu0
    %1002 = vmatprep.subr.bf16.mxu0 %v718
    %1003 = vmatpush1.bf16.msra.mxu0 %v717
    %1004 = vmatprep.subr.bf16.mxu0 %v720
    %1005 = vmatpush1.bf16.msra.mxu0 %v719
    %1006 = vmatprep.subr.bf16.mxu0 %v722
    %1007 = vmatpush1.bf16.msra.mxu0 %v721
    %1008 = vmatprep.subr.bf16.mxu0 %v724
    %1009 = vmatpush1.bf16.msra.mxu0 %v723
    %1010 = vmatprep.subr.bf16.mxu0 %v726
    %1011 = vmatpush1.bf16.msra.mxu0 %v725
    %1012 = vmatprep.subr.bf16.mxu0 %v728
    %1013 = vmatpush1.bf16.msra.mxu0 %v727
    %1014 = vmatprep.subr.bf16.mxu0 %v730
    %1015 = vmatpush1.bf16.msra.mxu0 %v729
    %1016 = vmatprep.subr.bf16.mxu0 %v732
    %1017 = vmatpush1.bf16.msra.mxu0 %v731
    %1018 = vmatprep.subr.bf16.mxu0 %v734
    %1019 = vmatpush1.bf16.msra.mxu0 %v733
    %1020 = vmatprep.subr.bf16.mxu0 %v736
    %1021 = vmatpush1.bf16.msra.mxu0 %v735
    %1022 = vmatprep.subr.bf16.mxu0 %v738
    %1023 = vmatpush1.bf16.msra.mxu0 %v737
    %1024 = vmatprep.subr.bf16.mxu0 %v740
    %1025 = vmatpush1.bf16.msra.mxu0 %v739
    %1026 = vmatprep.subr.bf16.mxu0 %v742
    %1027 = vmatpush1.bf16.msra.mxu0 %v741
    %1028 = vmatprep.subr.bf16.mxu0 %v744
    %1029 = vmatpush1.bf16.msra.mxu0 %v743
    %1030 = vmatprep.subr.bf16.mxu0 %v746
    %1031 = vmatpush1.bf16.msra.mxu0 %v745
    %1032 = vmatprep.subr.bf16.mxu0 %v748
    %1033 = vmatpush1.bf16.msra.mxu0 %v747
    %1034 = vmatprep.mubr.bf16.mxu0 %v256
    %1035 = vmatmul.mubr.bf16.gmra.mrb[0].mxu0 %v242
    %v1036 = vpop.f32.mrb[0].mxu0
    %v1037 = vadd.f32 %v996, %v1036
    %v1038 = vpop.f32.mrb[0].mxu0
    %v1039 = vadd.f32 %v998, %v1038
    %v1040 = vpop.f32.mrb[0].mxu0
    %v1041 = vpop.f32.mrb[0].mxu0
    %1042 = vdwg.mxu0
    %1043 = vmatprep.subr.bf16.mxu0 %v750
    %1044 = vmatpush1.bf16.msra.mxu0 %v749
    %1045 = vmatprep.subr.bf16.mxu0 %v752
    %1046 = vmatpush1.bf16.msra.mxu0 %v751
    %1047 = vmatprep.subr.bf16.mxu0 %v754
    %1048 = vmatpush1.bf16.msra.mxu0 %v753
    %1049 = vmatprep.subr.bf16.mxu0 %v756
    %1050 = vmatpush1.bf16.msra.mxu0 %v755
    %1051 = vmatprep.subr.bf16.mxu0 %v758
    %1052 = vmatpush1.bf16.msra.mxu0 %v757
    %1053 = vmatprep.subr.bf16.mxu0 %v760
    %1054 = vmatpush1.bf16.msra.mxu0 %v759
    %1055 = vmatprep.subr.bf16.mxu0 %v762
    %1056 = vmatpush1.bf16.msra.mxu0 %v761
    %1057 = vmatprep.subr.bf16.mxu0 %v764
    %1058 = vmatpush1.bf16.msra.mxu0 %v763
    %1059 = vmatprep.subr.bf16.mxu0 %v766
    %1060 = vmatpush1.bf16.msra.mxu0 %v765
    %1061 = vmatprep.subr.bf16.mxu0 %v768
    %1062 = vmatpush1.bf16.msra.mxu0 %v767
    %1063 = vmatprep.subr.bf16.mxu0 %v770
    %1064 = vmatpush1.bf16.msra.mxu0 %v769
    %1065 = vmatprep.subr.bf16.mxu0 %v772
    %1066 = vmatpush1.bf16.msra.mxu0 %v771
    %1067 = vmatprep.subr.bf16.mxu0 %v774
    %1068 = vmatpush1.bf16.msra.mxu0 %v773
    %1069 = vmatprep.subr.bf16.mxu0 %v776
    %1070 = vmatpush1.bf16.msra.mxu0 %v775
    %1071 = vmatprep.subr.bf16.mxu0 %v778
    %1072 = vmatpush1.bf16.msra.mxu0 %v777
    %1073 = vmatprep.subr.bf16.mxu0 %v780
    %1074 = vmatpush1.bf16.msra.mxu0 %v779
    %1075 = vmatprep.mubr.bf16.mxu0 %v260
    %1076 = vmatmul.mubr.bf16.gmra.mrb[0].mxu0 %v258
    %v1077 = vpop.f32.mrb[0].mxu0
    %v1078 = vadd.f32 %v1037, %v1077
    %v1079 = vpop.f32.mrb[0].mxu0
    %v1080 = vadd.f32 %v1039, %v1079
    %v1081 = vpop.f32.mrb[0].mxu0
    %v1082 = vpop.f32.mrb[0].mxu0
    %1083 = vdwg.mxu0
    %v1084 = vpack.c.bf16 %v1078, %v1078
    %v1085 = vpack.c.bf16 %v1080, %v1080
    %v1086 = vtanh.bf16.pop %v1084
    %v1087 = vtanh.bf16.pop %v1085
    %v1088 = vld [vmem:[#allocation7] sm:$0xff]
    %v1089 = vld [vmem:[#allocation7 + $0x8] sm:$0xff]
    %v1090 = vld [vmem:[#allocation7 + $0x10] sm:$0xff]
    %v1091 = vld [vmem:[#allocation7 + $0x18] sm:$0xff]
    %v1092 = vld [vmem:[#allocation7 + $0x20] sm:$0xff]
    %v1093 = vld [vmem:[#allocation7 + $0x28] sm:$0xff]
    %v1094 = vld [vmem:[#allocation7 + $0x30] sm:$0xff]
    %v1095 = vld [vmem:[#allocation7 + $0x38] sm:$0xff]
    %v1096 = vld [vmem:[#allocation7 + $0x40] sm:$0xff]
    %v1097 = vld [vmem:[#allocation7 + $0x48] sm:$0xff]
    %v1098 = vld [vmem:[#allocation7 + $0x50] sm:$0xff]
    %v1099 = vld [vmem:[#allocation7 + $0x58] sm:$0xff]
    %v1100 = vld [vmem:[#allocation7 + $0x60] sm:$0xff]
    %v1101 = vld [vmem:[#allocation7 + $0x68] sm:$0xff]
    %v1102 = vld [vmem:[#allocation7 + $0x70] sm:$0xff]
    %v1103 = vld [vmem:[#allocation7 + $0x78] sm:$0xff]
    %v1104 = vld [vmem:[#allocation7 + $0x80] sm:$0xff]
    %v1105 = vld [vmem:[#allocation7 + $0x88] sm:$0xff]
    %v1106 = vld [vmem:[#allocation7 + $0x90] sm:$0xff]
    %v1107 = vld [vmem:[#allocation7 + $0x98] sm:$0xff]
    %v1108 = vld [vmem:[#allocation7 + $0xa0] sm:$0xff]
    %v1109 = vld [vmem:[#allocation7 + $0xa8] sm:$0xff]
    %v1110 = vld [vmem:[#allocation7 + $0xb0] sm:$0xff]
    %v1111 = vld [vmem:[#allocation7 + $0xb8] sm:$0xff]
    %v1112 = vld [vmem:[#allocation7 + $0xc0] sm:$0xff]
    %v1113 = vld [vmem:[#allocation7 + $0xc8] sm:$0xff]
    %v1114 = vld [vmem:[#allocation7 + $0xd0] sm:$0xff]
    %v1115 = vld [vmem:[#allocation7 + $0xd8] sm:$0xff]
    %v1116 = vld [vmem:[#allocation7 + $0xe0] sm:$0xff]
    %v1117 = vld [vmem:[#allocation7 + $0xe8] sm:$0xff]
    %v1118 = vld [vmem:[#allocation7 + $0xf0] sm:$0xff]
    %v1119 = vld [vmem:[#allocation7 + $0xf8] sm:$0xff]
    %v1120 = vld [vmem:[%s4] sm:$0x3]
    %v1153 = vunpack.c.l.b16 %v1088
    %v1154 = vunpack.c.h.b16 %v1088
    %v1155 = vunpack.c.l.b16 %v1089
    %v1156 = vunpack.c.h.b16 %v1089
    %v1157 = vunpack.c.l.b16 %v1090
    %v1158 = vunpack.c.h.b16 %v1090
    %v1159 = vunpack.c.l.b16 %v1091
    %v1160 = vunpack.c.h.b16 %v1091
    %v1161 = vunpack.c.l.b16 %v1092
    %v1162 = vunpack.c.h.b16 %v1092
    %v1163 = vunpack.c.l.b16 %v1093
    %v1164 = vunpack.c.h.b16 %v1093
    %v1165 = vunpack.c.l.b16 %v1094
    %v1166 = vunpack.c.h.b16 %v1094
    %v1167 = vunpack.c.l.b16 %v1095
    %v1168 = vunpack.c.h.b16 %v1095
    %v1169 = vunpack.c.l.b16 %v1096
    %v1170 = vunpack.c.h.b16 %v1096
    %v1171 = vunpack.c.l.b16 %v1097
    %v1172 = vunpack.c.h.b16 %v1097
    %v1173 = vunpack.c.l.b16 %v1098
    %v1174 = vunpack.c.h.b16 %v1098
    %v1175 = vunpack.c.l.b16 %v1099
    %v1176 = vunpack.c.h.b16 %v1099
    %v1177 = vunpack.c.l.b16 %v1100
    %v1178 = vunpack.c.h.b16 %v1100
    %v1179 = vunpack.c.l.b16 %v1101
    %v1180 = vunpack.c.h.b16 %v1101
    %v1181 = vunpack.c.l.b16 %v1102
    %v1182 = vunpack.c.h.b16 %v1102
    %v1183 = vunpack.c.l.b16 %v1103
    %v1184 = vunpack.c.h.b16 %v1103
    %v1185 = vunpack.c.l.b16 %v1104
    %v1186 = vunpack.c.h.b16 %v1104
    %v1187 = vunpack.c.l.b16 %v1105
    %v1188 = vunpack.c.h.b16 %v1105
    %v1189 = vunpack.c.l.b16 %v1106
    %v1190 = vunpack.c.h.b16 %v1106
    %v1191 = vunpack.c.l.b16 %v1107
    %v1192 = vunpack.c.h.b16 %v1107
    %v1193 = vunpack.c.l.b16 %v1108
    %v1194 = vunpack.c.h.b16 %v1108
    %v1195 = vunpack.c.l.b16 %v1109
    %v1196 = vunpack.c.h.b16 %v1109
    %v1197 = vunpack.c.l.b16 %v1110
    %v1198 = vunpack.c.h.b16 %v1110
    %v1199 = vunpack.c.l.b16 %v1111
    %v1200 = vunpack.c.h.b16 %v1111
    %v1201 = vunpack.c.l.b16 %v1112
    %v1202 = vunpack.c.h.b16 %v1112
    %v1203 = vunpack.c.l.b16 %v1113
    %v1204 = vunpack.c.h.b16 %v1113
    %v1205 = vunpack.c.l.b16 %v1114
    %v1206 = vunpack.c.h.b16 %v1114
    %v1207 = vunpack.c.l.b16 %v1115
    %v1208 = vunpack.c.h.b16 %v1115
    %v1209 = vunpack.c.l.b16 %v1116
    %v1210 = vunpack.c.h.b16 %v1116
    %v1211 = vunpack.c.l.b16 %v1117
    %v1212 = vunpack.c.h.b16 %v1117
    %v1213 = vunpack.c.l.b16 %v1118
    %v1214 = vunpack.c.h.b16 %v1118
    %v1215 = vunpack.c.l.b16 %v1119
    %v1216 = vunpack.c.h.b16 %v1119
    %v1217 = vpack.c.b16 %v1155, %v1153
    %v1218 = vpack.c.b16 %v1156, %v1154
    %v1219 = vpack.c.b16 %v1159, %v1157
    %v1220 = vpack.c.b16 %v1160, %v1158
    %v1221 = vpack.c.b16 %v1163, %v1161
    %v1222 = vpack.c.b16 %v1164, %v1162
    %v1223 = vpack.c.b16 %v1167, %v1165
    %v1224 = vpack.c.b16 %v1168, %v1166
    %v1225 = vpack.c.b16 %v1171, %v1169
    %v1226 = vpack.c.b16 %v1172, %v1170
    %v1227 = vpack.c.b16 %v1175, %v1173
    %v1228 = vpack.c.b16 %v1176, %v1174
    %v1229 = vpack.c.b16 %v1179, %v1177
    %v1230 = vpack.c.b16 %v1180, %v1178
    %v1231 = vpack.c.b16 %v1183, %v1181
    %v1232 = vpack.c.b16 %v1184, %v1182
    %v1233 = vpack.c.b16 %v1187, %v1185
    %v1234 = vpack.c.b16 %v1188, %v1186
    %v1235 = vpack.c.b16 %v1191, %v1189
    %v1236 = vpack.c.b16 %v1192, %v1190
    %v1237 = vpack.c.b16 %v1195, %v1193
    %v1238 = vpack.c.b16 %v1196, %v1194
    %v1239 = vpack.c.b16 %v1199, %v1197
    %v1240 = vpack.c.b16 %v1200, %v1198
    %v1241 = vpack.c.b16 %v1203, %v1201
    %v1242 = vpack.c.b16 %v1204, %v1202
    %v1243 = vpack.c.b16 %v1207, %v1205
    %v1244 = vpack.c.b16 %v1208, %v1206
    %v1245 = vpack.c.b16 %v1211, %v1209
    %v1246 = vpack.c.b16 %v1212, %v1210
    %v1247 = vpack.c.b16 %v1215, %v1213
    %v1248 = vpack.c.b16 %v1216, %v1214
    %v1282 = vlaneseq
    %v1283 = vshrl.u32 %v1282, 7
    %v1284 = vsub.s32 0, %v1283
    %v1285 = vrot.slane %v1120, %v1284
    %v1286 = vlaneseq
    %v1287 = vshrl.u32 %v1286, 7
    %v1288 = vsub.s32 1, %v1287
    %v1289 = vrot.slane %v1120, %v1288
    %1292 = vmatprep.subr.bf16.mxu0 %v1218
    %1293 = vmatpush1.bf16.msra.mxu0 %v1217
    %1294 = vmatprep.subr.bf16.mxu0 %v1220
    %1295 = vmatpush1.bf16.msra.mxu0 %v1219
    %1296 = vmatprep.subr.bf16.mxu0 %v1222
    %1297 = vmatpush1.bf16.msra.mxu0 %v1221
    %1298 = vmatprep.subr.bf16.mxu0 %v1224
    %1299 = vmatpush1.bf16.msra.mxu0 %v1223
    %1300 = vmatprep.subr.bf16.mxu0 %v1226
    %1301 = vmatpush1.bf16.msra.mxu0 %v1225
    %1302 = vmatprep.subr.bf16.mxu0 %v1228
    %1303 = vmatpush1.bf16.msra.mxu0 %v1227
    %1304 = vmatprep.subr.bf16.mxu0 %v1230
    %1305 = vmatpush1.bf16.msra.mxu0 %v1229
    %1306 = vmatprep.subr.bf16.mxu0 %v1232
    %1307 = vmatpush1.bf16.msra.mxu0 %v1231
    %1308 = vmatprep.subr.bf16.mxu0 %v1234
    %1309 = vmatpush1.bf16.msra.mxu0 %v1233
    %1310 = vmatprep.subr.bf16.mxu0 %v1236
    %1311 = vmatpush1.bf16.msra.mxu0 %v1235
    %1312 = vmatprep.subr.bf16.mxu0 %v1238
    %1313 = vmatpush1.bf16.msra.mxu0 %v1237
    %1314 = vmatprep.subr.bf16.mxu0 %v1240
    %1315 = vmatpush1.bf16.msra.mxu0 %v1239
    %1316 = vmatprep.subr.bf16.mxu0 %v1242
    %1317 = vmatpush1.bf16.msra.mxu0 %v1241
    %1318 = vmatprep.subr.bf16.mxu0 %v1244
    %1319 = vmatpush1.bf16.msra.mxu0 %v1243
    %1320 = vmatprep.subr.bf16.mxu0 %v1246
    %1321 = vmatpush1.bf16.msra.mxu0 %v1245
    %1322 = vmatprep.subr.bf16.mxu0 %v1248
    %1323 = vmatpush1.bf16.msra.mxu0 %v1247
    %1324 = vmatprep.mubr.bf16.mxu0 %v1087
    %1325 = vmatmul.mubr.bf16.gmra.mrb[0].mxu0 %v1086
    %v1326 = vpop.f32.mrb[0].mxu0
    %v1327 = vadd.f32 %v1285, %v1326
    %v1328 = vpop.f32.mrb[0].mxu0
    %v1329 = vadd.f32 %v1289, %v1328
    %v1330 = vpop.f32.mrb[0].mxu0
    %v1331 = vpop.f32.mrb[0].mxu0
    %1332 = vdwg.mxu0
    %v1333 = vpack.c.bf16 %v1327, %v1327
    %v1334 = vpack.c.bf16 %v1329, %v1329
    %v1335 = vtanh.bf16.pop %v1333
    %v1336 = vtanh.bf16.pop %v1334
    %v1337 = vld [vmem:[#allocation8] sm:$0xf]
    %v1338 = vld [vmem:[#allocation8 + $0x4] sm:$0xf]
    %v1339 = vld [vmem:[#allocation8 + $0x8] sm:$0xf]
    %v1340 = vld [vmem:[#allocation8 + $0xc] sm:$0xf]
    %v1341 = vld [vmem:[#allocation8 + $0x10] sm:$0xf]
    %v1342 = vld [vmem:[#allocation8 + $0x14] sm:$0xf]
    %v1343 = vld [vmem:[#allocation8 + $0x18] sm:$0xf]
    %v1344 = vld [vmem:[#allocation8 + $0x1c] sm:$0xf]
    %v1345 = vld [vmem:[#allocation8 + $0x20] sm:$0xf]
    %v1346 = vld [vmem:[#allocation8 + $0x24] sm:$0xf]
    %v1347 = vld [vmem:[#allocation8 + $0x28] sm:$0xf]
    %v1348 = vld [vmem:[#allocation8 + $0x2c] sm:$0xf]
    %v1349 = vld [vmem:[#allocation8 + $0x30] sm:$0xf]
    %v1350 = vld [vmem:[#allocation8 + $0x34] sm:$0xf]
    %v1351 = vld [vmem:[#allocation8 + $0x38] sm:$0xf]
    %v1352 = vld [vmem:[#allocation8 + $0x3c] sm:$0xf]
    %v1353 = vld [vmem:[#allocation8 + $0x40] sm:$0xf]
    %v1354 = vld [vmem:[#allocation8 + $0x44] sm:$0xf]
    %v1355 = vld [vmem:[#allocation8 + $0x48] sm:$0xf]
    %v1356 = vld [vmem:[#allocation8 + $0x4c] sm:$0xf]
    %v1357 = vld [vmem:[#allocation8 + $0x50] sm:$0xf]
    %v1358 = vld [vmem:[#allocation8 + $0x54] sm:$0xf]
    %v1359 = vld [vmem:[#allocation8 + $0x58] sm:$0xf]
    %v1360 = vld [vmem:[#allocation8 + $0x5c] sm:$0xf]
    %v1361 = vld [vmem:[#allocation8 + $0x60] sm:$0xf]
    %v1362 = vld [vmem:[#allocation8 + $0x64] sm:$0xf]
    %v1363 = vld [vmem:[#allocation8 + $0x68] sm:$0xf]
    %v1364 = vld [vmem:[#allocation8 + $0x6c] sm:$0xf]
    %v1365 = vld [vmem:[#allocation8 + $0x70] sm:$0xf]
    %v1366 = vld [vmem:[#allocation8 + $0x74] sm:$0xf]
    %v1367 = vld [vmem:[#allocation8 + $0x78] sm:$0xf]
    %v1368 = vld [vmem:[#allocation8 + $0x7c] sm:$0xf]
    %v1369 = vld [vmem:[%s6] sm:$0x1]
    %v1402 = vunpack.c.l.b16 %v1337
    %v1403 = vunpack.c.l.b16 %v1338
    %v1404 = vunpack.c.l.b16 %v1339
    %v1405 = vunpack.c.l.b16 %v1340
    %v1406 = vunpack.c.l.b16 %v1341
    %v1407 = vunpack.c.l.b16 %v1342
    %v1408 = vunpack.c.l.b16 %v1343
    %v1409 = vunpack.c.l.b16 %v1344
    %v1410 = vunpack.c.l.b16 %v1345
    %v1411 = vunpack.c.l.b16 %v1346
    %v1412 = vunpack.c.l.b16 %v1347
    %v1413 = vunpack.c.l.b16 %v1348
    %v1414 = vunpack.c.l.b16 %v1349
    %v1415 = vunpack.c.l.b16 %v1350
    %v1416 = vunpack.c.l.b16 %v1351
    %v1417 = vunpack.c.l.b16 %v1352
    %v1418 = vunpack.c.l.b16 %v1353
    %v1419 = vunpack.c.l.b16 %v1354
    %v1420 = vunpack.c.l.b16 %v1355
    %v1421 = vunpack.c.l.b16 %v1356
    %v1422 = vunpack.c.l.b16 %v1357
    %v1423 = vunpack.c.l.b16 %v1358
    %v1424 = vunpack.c.l.b16 %v1359
    %v1425 = vunpack.c.l.b16 %v1360
    %v1426 = vunpack.c.l.b16 %v1361
    %v1427 = vunpack.c.l.b16 %v1362
    %v1428 = vunpack.c.l.b16 %v1363
    %v1429 = vunpack.c.l.b16 %v1364
    %v1430 = vunpack.c.l.b16 %v1365
    %v1431 = vunpack.c.l.b16 %v1366
    %v1432 = vunpack.c.l.b16 %v1367
    %v1433 = vunpack.c.l.b16 %v1368
    %v1434 = vpack.c.b16 %v1403, %v1402
    %v1435 = vpack.c.b16 %v1405, %v1404
    %v1436 = vpack.c.b16 %v1407, %v1406
    %v1437 = vpack.c.b16 %v1409, %v1408
    %v1438 = vpack.c.b16 %v1411, %v1410
    %v1439 = vpack.c.b16 %v1413, %v1412
    %v1440 = vpack.c.b16 %v1415, %v1414
    %v1441 = vpack.c.b16 %v1417, %v1416
    %v1442 = vpack.c.b16 %v1419, %v1418
    %v1443 = vpack.c.b16 %v1421, %v1420
    %v1444 = vpack.c.b16 %v1423, %v1422
    %v1445 = vpack.c.b16 %v1425, %v1424
    %v1446 = vpack.c.b16 %v1427, %v1426
    %v1447 = vpack.c.b16 %v1429, %v1428
    %v1448 = vpack.c.b16 %v1431, %v1430
    %v1449 = vpack.c.b16 %v1433, %v1432
    %1466 = vmatprep.subr.bf16.mxu0 0
    %1467 = vmatpush1.bf16.msra.mxu0 %v1434
    %1468 = vmatprep.subr.bf16.mxu0 0
    %1469 = vmatpush1.bf16.msra.mxu0 %v1435
    %1470 = vmatprep.subr.bf16.mxu0 0
    %1471 = vmatpush1.bf16.msra.mxu0 %v1436
    %1472 = vmatprep.subr.bf16.mxu0 0
    %1473 = vmatpush1.bf16.msra.mxu0 %v1437
    %1474 = vmatprep.subr.bf16.mxu0 0
    %1475 = vmatpush1.bf16.msra.mxu0 %v1438
    %1476 = vmatprep.subr.bf16.mxu0 0
    %1477 = vmatpush1.bf16.msra.mxu0 %v1439
    %1478 = vmatprep.subr.bf16.mxu0 0
    %1479 = vmatpush1.bf16.msra.mxu0 %v1440
    %1480 = vmatprep.subr.bf16.mxu0 0
    %1481 = vmatpush1.bf16.msra.mxu0 %v1441
    %1482 = vmatprep.subr.bf16.mxu0 0
    %1483 = vmatpush1.bf16.msra.mxu0 %v1442
    %1484 = vmatprep.subr.bf16.mxu0 0
    %1485 = vmatpush1.bf16.msra.mxu0 %v1443
    %1486 = vmatprep.subr.bf16.mxu0 0
    %1487 = vmatpush1.bf16.msra.mxu0 %v1444
    %1488 = vmatprep.subr.bf16.mxu0 0
    %1489 = vmatpush1.bf16.msra.mxu0 %v1445
    %1490 = vmatprep.subr.bf16.mxu0 0
    %1491 = vmatpush1.bf16.msra.mxu0 %v1446
    %1492 = vmatprep.subr.bf16.mxu0 0
    %1493 = vmatpush1.bf16.msra.mxu0 %v1447
    %1494 = vmatprep.subr.bf16.mxu0 0
    %1495 = vmatpush1.bf16.msra.mxu0 %v1448
    %1496 = vmatprep.subr.bf16.mxu0 0
    %1497 = vmatpush1.bf16.msra.mxu0 %v1449
    %1498 = vmatprep.mubr.bf16.mxu0 %v1336
    %1499 = vmatmul.mubr.bf16.gmra.mrb[0].mxu0 %v1335
    %v1500 = vpop.f32.mrb[0].mxu0
    %v1501 = vadd.f32 %v1369, %v1500
    %v1502 = vpop.f32.mrb[0].mxu0
    %v1503 = vpop.f32.mrb[0].mxu0
    %v1504 = vpop.f32.mrb[0].mxu0
    %1505 = vdwg.mxu0
    %v1506 = vmax.f32 %v1501, 0.0
    %v1507 = vand.u32 2147483647, %v1501
    %v1508 = vsub.f32 0.0, %v1507
    %v1509 = vmul.f32 %v1508, 1.442695
    %v1510 = vpow.pop %v1509
    %v1511 = vadd.f32 %v1510, 1.0
    %v1512 = vlog2.pop %v1511
    %v1513 = vmul.f32 %v1512, 0.6931472
    %v1514 = vmul.f32 -0.5, %v1510
    %v1515 = vadd.f32 %v1514, 1.0
    %v1516 = vmul.f32 %v1515, %v1510
    %v1517 = vand.u32 2147483647, %v1510
    %vm1518 = vcmp.lt.f32.partialorder %v1517, 0.0004427343
    %v1519 = vsel %vm1518, %v1516, %v1513
    %v1520 = vadd.f32 %v1506, %v1519
    %v1521 = vlaneseq
    %v1522 = vand.u32 %v1521, 127
    %vm1523 = vcmp.ge.s32.totalorder %v1522, 4
    %v1524 = vsel %vm1523, %v1520, %v1501
    %v1525 = vpack.c.bf16 %v1524, %v1524
    %vm1526 = vcmask 1040384
    %vm1527 = vsmask.f32 256
    %vm1528 = vmand %vm1526, %vm1527
    %v1529 = vld [vmem:[#allocation10] sm:$0x1]
    %v1530 = vsel %vm1528, %v1525, %v1529
    %1531 = vst [vmem:[#allocation10] sm:$0x1] %v1530
    // Predicated region
    $region46: #{tpu_custom_call.1} parent=1 // pred_check
      _
    $region47: #{tpu_custom_call.1} parent=1 // pred_check_branch
      %1533 = sbr.rel (0) target = $region49
    $region48: #{tpu_custom_call.1} parent=1 // pred_region
      %s1535 = ssub.s32 16, 16
      %1536 = vsyncadd [#allocation4], %s1535
      %s1538 = sshll.u32 [#allocation10], 4
      %s1539 = int_to_ptr.vmem [resolvable:$true] %s1538
      %1541 = dma.vmem_to_hbm [thread:$0]  %s1539, 16, %s7, [#allocation4]
    $region49: #{tpu_custom_call.1} parent=1 // pred_fallthru
      _
    // Predicated region
    $region50: #{tpu_custom_call.1} parent=1 // pred_check
      _
    $region51: #{tpu_custom_call.1} parent=1 // pred_check_branch
      %1543 = sbr.rel (0) target = $region53
    $region52: #{tpu_custom_call.1} parent=1 // pred_region
      %1544 = dma.done [#allocation4], 16
    $region53: #{tpu_custom_call.1} parent=1 // pred_fallthru
      _
    %1545 = vsyncpa [#allocation3], 1
    %1546 = vsyncpa [#allocation6], 1
    %1547 = vsyncpa [#allocation9], 1
    %1548 = vsyncpa [#allocation4], 1

</llo_original>
